<compile_context>
chip_gen: v5e
topology: v5e:2x2
jax: 0.10.0
libtpu: 0.0.40
codegen_flags: <defaults>
</compile_context>

<pallas_src>
import jax
import jax.numpy as jnp
from jax.experimental import pallas as pl
from jax.experimental.pallas import tpu as pltpu  # noqa: F401  (TPU backend selection / parity with other kernels)


def _aliased_identity_kernel(x_hbm_ref, o_hbm_ref):
    # Output buffer aliases the input buffer (input_output_aliases={0: 0}),
    # so it already holds x.  Nothing to compute, nothing to move.
    del x_hbm_ref, o_hbm_ref


def _identity_pallas(x):
    """Pallas identity (zero-copy via output/input buffer aliasing)."""
    squeeze_back = False
    if x.ndim == 0:
        # Give the op a rank-1 view; restore the 0-d shape afterwards.
        x = x.reshape(1)
        squeeze_back = True

    out = pl.pallas_call(
        _aliased_identity_kernel,
        out_shape=jax.ShapeDtypeStruct(x.shape, x.dtype),
        in_specs=[pl.BlockSpec(memory_space=pl.ANY)],
        out_specs=pl.BlockSpec(memory_space=pl.ANY),
        input_output_aliases={0: 0},
    )(x)

    if squeeze_back:
        out = out.reshape(())
    return out


def stop_gradient_pallas(x):
    # .detach(): gradients are blocked at trace level via lax.stop_gradient
    # (no backward kernel, no zero write); the forward identity is the
    # aliased (zero-copy) Pallas call above.
    return _identity_pallas(jax.lax.stop_gradient(x))


class StopGradient:
    """JAX/Pallas equivalent of the PyTorch StopGradient module (no params)."""

    def __call__(self, x):
        return stop_gradient_pallas(x)


if __name__ == "__main__":
    key = jax.random.PRNGKey(0)
    # NCHW-style small input consistent with a conv-ish module usage.
    x = jax.random.normal(key, (2, 4, 16, 16), dtype=jnp.float32)

    module = StopGradient()
    y = jax.block_until_ready(module(x))

    # Forward must be exact identity.
    assert y.shape == x.shape and y.dtype == x.dtype
    assert bool(jnp.all(y == x))

    # Also exercise the jitted path (where buffer aliasing pays off).
    y_jit = jax.block_until_ready(jax.jit(module.__call__)(x))
    assert bool(jnp.all(y_jit == x))

    # Gradient must be stopped (all zeros), matching .detach() semantics.
    g = jax.grad(lambda v: jnp.sum(module(v) ** 2))(x)
    g = jax.block_until_ready(g)
    assert bool(jnp.all(g == 0.0))

    print("KERNEL_OK")
</pallas_src>

<mosaic_0001>
module attributes {stable_mosaic.version = 11 : i64} {
  func.func @_aliased_identity_kernel(%arg0: memref<2x4x16x16xf32, #tpu.memory_space<any>>, %arg1: memref<2x4x16x16xf32, #tpu.memory_space<any>>) attributes {dimension_semantics = [], scalar_prefetch = 0 : i64, scratch_operands = 0 : i64, tpu.core_type = #tpu.core_type<tc>} {
    return
  }
}

</mosaic_0001>

<llo_original>
// kernel: tpu_custom_call.1
$region0: #{tpu_custom_call.1}
  #allocation0 [shape = 'u32[]', space=smem, size = 0x4, offset = 0x4, fixed_abs, tag = 'smem constant byte address 0x4 - core index']
  #allocation1 [shape = 'u32[72,128]{1,0:T(1,128)}', space=vmem, size = 0x9000, scoped, tag = 'internal scratch']
  %s0 = inlined_call_operand.hbm [shape: f32[2,4,16,16], index: 0, kind: input, shape index: {}, may-alias: {0,1}]
  %s1 = inlined_call_operand.hbm [shape: f32[2,4,16,16], index: 1, kind: output, shape index: {}, may-alias: {0,1}]
  %s2 = sld [smem:[#allocation0]]
  $region2: #{tpu_custom_call.1} parent=0
    _
  %s4 = ssub.s32 1, %s2
  %s5 = scalar_select 0, %s4, %s2

</llo_original>
